<compile_context>
chip_gen: v7x
topology: tpu7x:2x2x1
jax: 0.10.0
libtpu: 0.0.40
codegen_flags: <defaults>
</compile_context>

<pallas_src>
import jax
import jax.numpy as jnp
from jax import lax
from jax.experimental import pallas as pl
from jax.experimental.pallas import tpu as pltpu


def _round_up(n, m):
    return ((n + m - 1) // m) * m


def _choose_tile_b(B, d_in, requested=None):
    """Batch tile: >=1 MiB streamed f32 input per step, 8/128 aligned,
    and >=2 tiles when B >= 256 (v7x megacore)."""
    B8 = _round_up(B, 8)
    if requested is None:
        tile_b = max(256, (1 << 20) // (d_in * 4))     # ~1 MiB of f32 input / step
    else:
        tile_b = int(requested)
    tile_b = _round_up(max(tile_b, 8), 8)              # sublane multiple, always
    tile_b = min(tile_b, 1 << 16)
    if tile_b >= B8:
        if B8 >= 256:
            # Split into (at least) 2 tiles so both v7x TensorCores get work.
            half = _round_up(-(-B8 // 2), 128)
            tile_b = half if half < B8 else B8
        else:
            tile_b = B8                                # single tile == full batch
    else:
        tile_b = _round_up(tile_b, 128)                # lane-dense (1, tile_b) out blocks
        tile_b = min(tile_b, 1 << 16)
    return tile_b


def discriminator_forward(x, y, z, params, *, tile_b=None):
    """x: [B, state], y: [B, con], z: [B, noise] -> [B, 1] (float32)."""
    B, state = x.shape
    con = y.shape[1]
    noise = z.shape[1]
    d_in = state + noise + con
    H = params["w1"].shape[1]

    tile_b = _choose_tile_b(B, d_in, tile_b)
    ntiles = pl.cdiv(B, tile_b)
    padded = ntiles * tile_b

    f32 = jnp.float32

    # One-time tiny transposes so the whole MLP runs in (feature, batch) layout.
    w1t = params["w1"].T                   # (H, d_in)
    w2t = params["w2"].T                   # (H, H)
    w3t = params["w3"].T                   # (H, H)
    w4t = params["w4"].T                   # (1, H)
    b1t = params["b1"].reshape(H, 1)
    b2t = params["b2"].reshape(H, 1)
    b3t = params["b3"].reshape(H, 1)
    b4 = params["b4"].reshape(1, 1)

    def kernel(x_ref, z_ref, y_ref,
               w1t_ref, b1_ref, w2t_ref, b2_ref, w3t_ref, b3_ref,
               w4t_ref, b4_ref, o_ref, cat_ref):
        # Fused concat: three static lane-range writes into one VMEM scratch.
        cat_ref[:, 0:state] = x_ref[...]
        cat_ref[:, state:state + noise] = z_ref[...]
        cat_ref[:, state + noise:d_in] = y_ref[...]
        cat = cat_ref[...]                                   # (tile_b, d_in)

        # Layer 1 (transposed output): h1T[h, b] = sum_k W1[k, h] * cat[b, k]
        h = lax.dot_general(w1t_ref[...], cat,
                            (((1,), (1,)), ((), ())),
                            preferred_element_type=f32)      # (H, tile_b)
        h = jnp.maximum(h + b1_ref[...], 0.0)

        # Layers 2 & 3: natural (H,H) @ (H, tile_b) matmuls, f32 throughout.
        h = jnp.maximum(
            jnp.dot(w2t_ref[...], h, preferred_element_type=f32) + b2_ref[...],
            0.0)
        h = jnp.maximum(
            jnp.dot(w3t_ref[...], h, preferred_element_type=f32) + b3_ref[...],
            0.0)

        # Layer 4: (1, H) @ (H, tile_b) -> lane-dense (1, tile_b) logits.
        logits = jnp.dot(w4t_ref[...], h,
                         preferred_element_type=f32) + b4_ref[...]

        if padded != B:
            # Mask undefined tail rows of a partial last tile before sigmoid.
            col = (lax.broadcasted_iota(jnp.int32, (1, tile_b), 1)
                   + pl.program_id(0) * tile_b)
            logits = jnp.where(col < B, logits, 0.0)

        # Sigmoid; reciprocal goes to the EUP slot.
        sig = pl.reciprocal(1.0 + jnp.exp(-logits), approx=True)
        o_ref[...] = sig.astype(o_ref.dtype)

    act = lambda d: pl.BlockSpec((tile_b, d), lambda i: (i, 0))
    wsp = lambda shp: pl.BlockSpec(shp, lambda i: (0, 0))    # resident weights

    # Explicit VMEM budget: double-buffered activations/out + weights + scratch.
    itemsize = x.dtype.itemsize
    w_bytes = sum(int(a.size) * a.dtype.itemsize
                  for a in (w1t, b1t, w2t, b2t, w3t, b3t, w4t, b4))
    act_bytes = tile_b * (d_in + 1) * itemsize
    need = 2 * act_bytes + 2 * w_bytes + tile_b * d_in * itemsize + (4 << 20)
    vmem_limit = int(min(max(need, 32 << 20), 64 << 20))

    out_row = pl.pallas_call(
        kernel,
        out_shape=jax.ShapeDtypeStruct((1, padded), jnp.float32),
        grid=(ntiles,),
        in_specs=[
            act(state), act(noise), act(con),                # x, z, y tiles
            wsp((H, d_in)), wsp((H, 1)),                     # layer 1
            wsp((H, H)), wsp((H, 1)),                        # layer 2
            wsp((H, H)), wsp((H, 1)),                        # layer 3
            wsp((1, H)), wsp((1, 1)),                        # layer 4
        ],
        out_specs=pl.BlockSpec((1, tile_b), lambda i: (0, i)),
        scratch_shapes=[pltpu.VMEM((tile_b, d_in), x.dtype)],
        compiler_params=pltpu.CompilerParams(
            dimension_semantics=("parallel",),
            vmem_limit_bytes=vmem_limit),
    )(x, z, y, w1t, b1t, w2t, b2t, w3t, b3t, w4t, b4)

    # Lane-dense padded row -> [B, 1]
    return out_row.reshape(-1)[:B].reshape(B, 1)


def init_params(key, state_size, noise_size, con_size, hidden_size):
    d_in = state_size + con_size + noise_size
    ks = jax.random.split(key, 8)

    def lin(kw, kb, fan_in, fan_out):
        bound = 1.0 / jnp.sqrt(fan_in)
        w = jax.random.uniform(kw, (fan_in, fan_out), jnp.float32, -bound, bound)
        b = jax.random.uniform(kb, (1, fan_out), jnp.float32, -bound, bound)
        return w, b

    w1, b1 = lin(ks[0], ks[1], d_in, hidden_size)
    w2, b2 = lin(ks[2], ks[3], hidden_size, hidden_size)
    w3, b3 = lin(ks[4], ks[5], hidden_size, hidden_size)
    w4, b4 = lin(ks[6], ks[7], hidden_size, 1)
    return dict(w1=w1, b1=b1, w2=w2, b2=b2, w3=w3, b3=b3, w4=w4, b4=b4)


def reference_forward(x, y, z, p):
    out = jnp.concatenate([x, z, y], axis=-1)
    out = jnp.maximum(out @ p["w1"] + p["b1"], 0.0)
    out = jnp.maximum(out @ p["w2"] + p["b2"], 0.0)
    out = jnp.maximum(out @ p["w3"] + p["b3"], 0.0)
    return jax.nn.sigmoid(out @ p["w4"] + p["b4"])


if __name__ == "__main__":
    # cfg['general'] sizes (small, deterministic)
    state_size, noise_size, con_size, hidden_size = 16, 8, 8, 32

    key = jax.random.PRNGKey(0)
    kx, ky, kz, kp = jax.random.split(key, 4)
    params = init_params(kp, state_size, noise_size, con_size, hidden_size)

    # Small single-tile case.
    batch = 8
    x = jax.random.normal(kx, (batch, state_size), jnp.float32)
    y = jax.random.normal(ky, (batch, con_size), jnp.float32)
    z = jax.random.normal(kz, (batch, noise_size), jnp.float32)
    ref = reference_forward(x, y, z, params)
    out = jax.block_until_ready(discriminator_forward(x, y, z, params))
    assert out.shape == (batch, 1)
    assert jnp.allclose(out, ref, atol=2e-3, rtol=2e-3), \
        f"small-batch max diff {jnp.max(jnp.abs(out - ref))}"

    # Multi-tile case with a partial last tile (exercises 2-tile grid + tail mask).
    batch2 = 300
    kx2, ky2, kz2 = jax.random.split(jax.random.PRNGKey(1), 3)
    x2 = jax.random.normal(kx2, (batch2, state_size), jnp.float32)
    y2 = jax.random.normal(ky2, (batch2, con_size), jnp.float32)
    z2 = jax.random.normal(kz2, (batch2, noise_size), jnp.float32)
    ref2 = reference_forward(x2, y2, z2, params)
    out2 = jax.block_until_ready(discriminator_forward(x2, y2, z2, params))
    assert out2.shape == (batch2, 1)
    assert jnp.allclose(out2, ref2, atol=2e-3, rtol=2e-3), \
        f"multi-tile max diff {jnp.max(jnp.abs(out2 - ref2))}"

    print("KERNEL_OK")
</pallas_src>

<mosaic_0001>
module attributes {stable_mosaic.version = 11 : i64} {
  func.func @kernel(%arg0: i32, %arg1: memref<8x16xf32, #tpu.memory_space<vmem>>, %arg2: memref<8x8xf32, #tpu.memory_space<vmem>>, %arg3: memref<8x8xf32, #tpu.memory_space<vmem>>, %arg4: memref<32x32xf32, #tpu.memory_space<vmem>>, %arg5: memref<32x1xf32, #tpu.memory_space<vmem>>, %arg6: memref<32x32xf32, #tpu.memory_space<vmem>>, %arg7: memref<32x1xf32, #tpu.memory_space<vmem>>, %arg8: memref<32x32xf32, #tpu.memory_space<vmem>>, %arg9: memref<32x1xf32, #tpu.memory_space<vmem>>, %arg10: memref<1x32xf32, #tpu.memory_space<vmem>>, %arg11: memref<1x1xf32, #tpu.memory_space<vmem>>, %arg12: memref<1x8xf32, #tpu.memory_space<vmem>>, %arg13: memref<8x32xf32, #tpu.memory_space<vmem>>) attributes {dimension_semantics = [#tpu.dimension_semantics<parallel>], iteration_bounds = array<i64: 1>, scalar_prefetch = 0 : i64, scratch_operands = 1 : i64, tpu.core_type = #tpu.core_type<tc>, window_params = [{transform_indices = @transform_0, window_bounds = array<i64: 8, 16>}, {transform_indices = @transform_1, window_bounds = array<i64: 8, 8>}, {transform_indices = @transform_2, window_bounds = array<i64: 8, 8>}, {pipeline_mode = #tpu.pipeline_mode<synchronous>, transform_indices = @transform_3, window_bounds = array<i64: 32, 32>}, {pipeline_mode = #tpu.pipeline_mode<synchronous>, transform_indices = @transform_4, window_bounds = array<i64: 32, 1>}, {pipeline_mode = #tpu.pipeline_mode<synchronous>, transform_indices = @transform_5, window_bounds = array<i64: 32, 32>}, {pipeline_mode = #tpu.pipeline_mode<synchronous>, transform_indices = @transform_6, window_bounds = array<i64: 32, 1>}, {pipeline_mode = #tpu.pipeline_mode<synchronous>, transform_indices = @transform_7, window_bounds = array<i64: 32, 32>}, {pipeline_mode = #tpu.pipeline_mode<synchronous>, transform_indices = @transform_8, window_bounds = array<i64: 32, 1>}, {pipeline_mode = #tpu.pipeline_mode<synchronous>, transform_indices = @transform_9, window_bounds = array<i64: 1, 32>}, {pipeline_mode = #tpu.pipeline_mode<synchronous>, transform_indices = @transform_10, window_bounds = array<i64: 1, 1>}, {transform_indices = @transform_11, window_bounds = array<i64: 1, 8>}]} {
    %c0 = arith.constant 0 : index
    %c0_0 = arith.constant 0 : index
    %0 = vector.load %arg1[%c0, %c0_0] : memref<8x16xf32, #tpu.memory_space<vmem>>, vector<8x16xf32>
    %c0_1 = arith.constant 0 : index
    %c0_2 = arith.constant 0 : index
    %1 = vector.load %arg13[%c0_1, %c0_2] : memref<8x32xf32, #tpu.memory_space<vmem>>, vector<8x16xf32>
    tpu.vector_store %arg13[%c0_1, %c0_2], %0 {strides = array<i32>} : memref<8x32xf32, #tpu.memory_space<vmem>>, vector<8x16xf32>,
    %c0_3 = arith.constant 0 : index
    %c0_4 = arith.constant 0 : index
    %2 = vector.load %arg2[%c0_3, %c0_4] : memref<8x8xf32, #tpu.memory_space<vmem>>, vector<8x8xf32>
    %c0_5 = arith.constant 0 : index
    %c16 = arith.constant 16 : index
    %3 = vector.load %arg13[%c0_5, %c16] : memref<8x32xf32, #tpu.memory_space<vmem>>, vector<8x8xf32>
    tpu.vector_store %arg13[%c0_5, %c16], %2 {strides = array<i32>} : memref<8x32xf32, #tpu.memory_space<vmem>>, vector<8x8xf32>,
    %c0_6 = arith.constant 0 : index
    %c0_7 = arith.constant 0 : index
    %4 = vector.load %arg3[%c0_6, %c0_7] : memref<8x8xf32, #tpu.memory_space<vmem>>, vector<8x8xf32>
    %c0_8 = arith.constant 0 : index
    %c24 = arith.constant 24 : index
    %5 = vector.load %arg13[%c0_8, %c24] : memref<8x32xf32, #tpu.memory_space<vmem>>, vector<8x8xf32>
    tpu.vector_store %arg13[%c0_8, %c24], %4 {strides = array<i32>} : memref<8x32xf32, #tpu.memory_space<vmem>>, vector<8x8xf32>,
    %c0_9 = arith.constant 0 : index
    %c0_10 = arith.constant 0 : index
    %6 = vector.load %arg13[%c0_9, %c0_10] : memref<8x32xf32, #tpu.memory_space<vmem>>, vector<8x32xf32>
    %c0_11 = arith.constant 0 : index
    %c0_12 = arith.constant 0 : index
    %7 = vector.load %arg4[%c0_11, %c0_12] : memref<32x32xf32, #tpu.memory_space<vmem>>, vector<32x32xf32>
    %cst = arith.constant dense<0.000000e+00> : vector<32x8xf32>
    %8 = tpu.matmul %7, %6, %cst {dimension_numbers = #tpu.dot_dimension_numbers<[1], [1], [0], [0], [0, 0, 1, 0], [], []>} : vector<32x32xf32>, vector<8x32xf32>, vector<32x8xf32> -> vector<32x8xf32>
    %c0_13 = arith.constant 0 : index
    %c0_14 = arith.constant 0 : index
    %9 = vector.load %arg5[%c0_13, %c0_14] : memref<32x1xf32, #tpu.memory_space<vmem>>, vector<32x1xf32>
    %10 = vector.broadcast %9 : vector<32x1xf32> to vector<32x8xf32>
    %11 = arith.addf %8, %10 : vector<32x8xf32>
    %cst_15 = arith.constant 0.000000e+00 : f32
    %12 = vector.broadcast %cst_15 : f32 to vector<32x8xf32>
    %13 = arith.maximumf %11, %12 : vector<32x8xf32>
    %c0_16 = arith.constant 0 : index
    %c0_17 = arith.constant 0 : index
    %14 = vector.load %arg6[%c0_16, %c0_17] : memref<32x32xf32, #tpu.memory_space<vmem>>, vector<32x32xf32>
    %cst_18 = arith.constant dense<0.000000e+00> : vector<32x8xf32>
    %15 = tpu.matmul %14, %13, %cst_18 {dimension_numbers = #tpu.dot_dimension_numbers<[1], [0], [0], [1], [0, 0, 1, 1], [], []>} : vector<32x32xf32>, vector<32x8xf32>, vector<32x8xf32> -> vector<32x8xf32>
    %c0_19 = arith.constant 0 : index
    %c0_20 = arith.constant 0 : index
    %16 = vector.load %arg7[%c0_19, %c0_20] : memref<32x1xf32, #tpu.memory_space<vmem>>, vector<32x1xf32>
    %17 = vector.broadcast %16 : vector<32x1xf32> to vector<32x8xf32>
    %18 = arith.addf %15, %17 : vector<32x8xf32>
    %cst_21 = arith.constant 0.000000e+00 : f32
    %19 = vector.broadcast %cst_21 : f32 to vector<32x8xf32>
    %20 = arith.maximumf %18, %19 : vector<32x8xf32>
    %c0_22 = arith.constant 0 : index
    %c0_23 = arith.constant 0 : index
    %21 = vector.load %arg8[%c0_22, %c0_23] : memref<32x32xf32, #tpu.memory_space<vmem>>, vector<32x32xf32>
    %cst_24 = arith.constant dense<0.000000e+00> : vector<32x8xf32>
    %22 = tpu.matmul %21, %20, %cst_24 {dimension_numbers = #tpu.dot_dimension_numbers<[1], [0], [0], [1], [0, 0, 1, 1], [], []>} : vector<32x32xf32>, vector<32x8xf32>, vector<32x8xf32> -> vector<32x8xf32>
    %c0_25 = arith.constant 0 : index
    %c0_26 = arith.constant 0 : index
    %23 = vector.load %arg9[%c0_25, %c0_26] : memref<32x1xf32, #tpu.memory_space<vmem>>, vector<32x1xf32>
    %24 = vector.broadcast %23 : vector<32x1xf32> to vector<32x8xf32>
    %25 = arith.addf %22, %24 : vector<32x8xf32>
    %cst_27 = arith.constant 0.000000e+00 : f32
    %26 = vector.broadcast %cst_27 : f32 to vector<32x8xf32>
    %27 = arith.maximumf %25, %26 : vector<32x8xf32>
    %c0_28 = arith.constant 0 : index
    %c0_29 = arith.constant 0 : index
    %28 = vector.load %arg10[%c0_28, %c0_29] : memref<1x32xf32, #tpu.memory_space<vmem>>, vector<1x32xf32>
    %cst_30 = arith.constant dense<0.000000e+00> : vector<1x8xf32>
    %29 = tpu.matmul %28, %27, %cst_30 {dimension_numbers = #tpu.dot_dimension_numbers<[1], [0], [0], [1], [0, 0, 1, 1], [], []>} : vector<1x32xf32>, vector<32x8xf32>, vector<1x8xf32> -> vector<1x8xf32>
    %c0_31 = arith.constant 0 : index
    %c0_32 = arith.constant 0 : index
    %30 = vector.load %arg11[%c0_31, %c0_32] : memref<1x1xf32, #tpu.memory_space<vmem>>, vector<1x1xf32>
    %31 = vector.broadcast %30 : vector<1x1xf32> to vector<1x8xf32>
    %32 = arith.addf %29, %31 : vector<1x8xf32>
    %cst_33 = arith.constant 0.000000e+00 : f32
    %33 = vector.broadcast %cst_33 : f32 to vector<1x8xf32>
    %34 = arith.subf %33, %32 : vector<1x8xf32>
    %35 = math.exp %34 : vector<1x8xf32>
    %cst_34 = arith.constant 1.000000e+00 : f32
    %36 = vector.broadcast %cst_34 : f32 to vector<1x8xf32>
    %37 = arith.addf %36, %35 : vector<1x8xf32>
    %38 = tpu.reciprocal %37 {approx = true} : vector<1x8xf32> -> vector<1x8xf32>
    %c0_35 = arith.constant 0 : index
    %c0_36 = arith.constant 0 : index
    %39 = vector.load %arg12[%c0_35, %c0_36] : memref<1x8xf32, #tpu.memory_space<vmem>>, vector<1x8xf32>
    tpu.vector_store %arg12[%c0_35, %c0_36], %38 {strides = array<i32>} : memref<1x8xf32, #tpu.memory_space<vmem>>, vector<1x8xf32>,
    return
  }
  func.func @transform_0(%arg0: i32) -> (i32, i32) {
    %c0_i32 = arith.constant 0 : i32
    %c0_i32_0 = arith.constant 0 : i32
    return %arg0, %c0_i32 : i32, i32
  }
  func.func @transform_1(%arg0: i32) -> (i32, i32) {
    %c0_i32 = arith.constant 0 : i32
    %c0_i32_0 = arith.constant 0 : i32
    return %arg0, %c0_i32 : i32, i32
  }
  func.func @transform_2(%arg0: i32) -> (i32, i32) {
    %c0_i32 = arith.constant 0 : i32
    %c0_i32_0 = arith.constant 0 : i32
    return %arg0, %c0_i32 : i32, i32
  }
  func.func @transform_3(%arg0: i32) -> (i32, i32) {
    %c0_i32 = arith.constant 0 : i32
    %c0_i32_0 = arith.constant 0 : i32
    %c0_i32_1 = arith.constant 0 : i32
    return %c0_i32, %c0_i32_0 : i32, i32
  }
  func.func @transform_4(%arg0: i32) -> (i32, i32) {
    %c0_i32 = arith.constant 0 : i32
    %c0_i32_0 = arith.constant 0 : i32
    %c0_i32_1 = arith.constant 0 : i32
    return %c0_i32, %c0_i32_0 : i32, i32
  }
  func.func @transform_5(%arg0: i32) -> (i32, i32) {
    %c0_i32 = arith.constant 0 : i32
    %c0_i32_0 = arith.constant 0 : i32
    %c0_i32_1 = arith.constant 0 : i32
    return %c0_i32, %c0_i32_0 : i32, i32
  }
  func.func @transform_6(%arg0: i32) -> (i32, i32) {
    %c0_i32 = arith.constant 0 : i32
    %c0_i32_0 = arith.constant 0 : i32
    %c0_i32_1 = arith.constant 0 : i32
    return %c0_i32, %c0_i32_0 : i32, i32
  }
  func.func @transform_7(%arg0: i32) -> (i32, i32) {
    %c0_i32 = arith.constant 0 : i32
    %c0_i32_0 = arith.constant 0 : i32
    %c0_i32_1 = arith.constant 0 : i32
    return %c0_i32, %c0_i32_0 : i32, i32
  }
  func.func @transform_8(%arg0: i32) -> (i32, i32) {
    %c0_i32 = arith.constant 0 : i32
    %c0_i32_0 = arith.constant 0 : i32
    %c0_i32_1 = arith.constant 0 : i32
    return %c0_i32, %c0_i32_0 : i32, i32
  }
  func.func @transform_9(%arg0: i32) -> (i32, i32) {
    %c0_i32 = arith.constant 0 : i32
    %c0_i32_0 = arith.constant 0 : i32
    %c0_i32_1 = arith.constant 0 : i32
    return %c0_i32, %c0_i32_0 : i32, i32
  }
  func.func @transform_10(%arg0: i32) -> (i32, i32) {
    %c0_i32 = arith.constant 0 : i32
    %c0_i32_0 = arith.constant 0 : i32
    %c0_i32_1 = arith.constant 0 : i32
    return %c0_i32, %c0_i32_0 : i32, i32
  }
  func.func @transform_11(%arg0: i32) -> (i32, i32) {
    %c0_i32 = arith.constant 0 : i32
    %c0_i32_0 = arith.constant 0 : i32
    return %c0_i32, %arg0 : i32, i32
  }
}

</mosaic_0001>

<llo_original>
// kernel: tpu_custom_call.1
$region0: #{tpu_custom_call.1}
  #allocation0 [shape = 'u32[]', space=smem, size = 0x4, offset = 0x4, fixed_abs, tag = 'smem constant byte address 0x4 - core index']
  #allocation1 [shape = 'u32[144,128]{1,0:T(1,128)}', space=vmem, size = 0x12000, scoped, tag = 'internal scratch']
  #allocation2 [shape = 'f32[8,32]{1,0:T(8,128)}', space=vmem, size = 0x1000, scoped, tag = 'scratch operand']
  #allocation3 [shape = 'f32[1,1]{1,0:T(1,128)S(1)}', space=vmem, size = 0x200, scoped, tag = 'scoped memory for tpu_custom_call.1']
  %s0 = inlined_call_operand.hbm [shape: f32[8,16], index: 0, kind: input, shape index: {}]
  %s1 = inlined_call_operand.vmem [shape: f32[8,8], index: 1, kind: input, shape index: {}]
  %s2 = inlined_call_operand.hbm [shape: f32[8,8], index: 2, kind: input, shape index: {}]
  %s3 = inlined_call_operand.vmem [shape: f32[32,32], index: 3, kind: input, shape index: {}]
  %s4 = inlined_call_operand.vmem [shape: f32[32,1], index: 4, kind: input, shape index: {}]
  %s5 = inlined_call_operand.vmem [shape: f32[32,32], index: 5, kind: input, shape index: {}]
  %s6 = inlined_call_operand.vmem [shape: f32[32,1], index: 6, kind: input, shape index: {}]
  %s7 = inlined_call_operand.vmem [shape: f32[32,32], index: 7, kind: input, shape index: {}]
  %s8 = inlined_call_operand.vmem [shape: f32[32,1], index: 8, kind: input, shape index: {}]
  %s9 = inlined_call_operand.vmem [shape: f32[1,32], index: 9, kind: input, shape index: {}]
  %s10 = inlined_call_operand.<no memory space> [shape: f32[1,1], index: 10, kind: input, shape index: {}]
  %s11 = inlined_call_operand.hbm [shape: f32[1,8], index: 11, kind: output, shape index: {}]
  %s12 = sld [smem:[#allocation0]]
  $region62: #{tpu_custom_call.1} parent=0
    _
  %s14 = ssub.s32 1, %s12
  %s15 = scalar_select 0, %s14, %s12
  %v16 = vstv %s10
  %17 = vst [vmem:[#allocation3] sm:$0x1] %v16
  $region1: #{tpu_custom_call.1} parent=0
    #allocation4 [shape = 'u8[4096]{0}', space=vmem, size = 0x1000, scoped, tag = 'input window, operand 0, single buffered']
    #allocation5 [shape = 's32[1]{0}', space=sflag, size = 0x4, scoped, tag = 'scoped memory for tpu_custom_call.1']
    #allocation6 [shape = 's32[1]{0}', space=sflag, size = 0x4, scoped, tag = 'scoped memory for tpu_custom_call.1']
    #allocation7 [shape = 'u8[4096]{0}', space=vmem, size = 0x1000, scoped, tag = 'input window, operand 2, single buffered']
    #allocation8 [shape = 's32[1]{0}', space=sflag, size = 0x4, scoped, tag = 'scoped memory for tpu_custom_call.1']
    #allocation9 [shape = 'u8[512]{0}', space=vmem, size = 0x400, scoped, tag = 'output window, operand 0, single buffered']
    %18 = vsyncpa [#allocation5], 0
    %19 = vsyncpa [#allocation8], 0
    %20 = vsyncpa [#allocation6], 0
    // Predicated region
    $region2: #{tpu_custom_call.1} parent=1 // pred_check
      _
    $region3: #{tpu_custom_call.1} parent=1 // pred_check_branch
      %22 = sbr.rel (0) target = $region5
    $region4: #{tpu_custom_call.1} parent=1 // pred_region
      %s24 = ssub.s32 128, 128
      %25 = vsyncadd [#allocation5], %s24
      %s27 = sshll.u32 [#allocation4], 4
      %s28 = int_to_ptr.vmem [resolvable:$true] %s27
      %30 = dma.hbm_to_vmem [thread:$0]  %s0, 128, %s28, [#allocation5]
    $region5: #{tpu_custom_call.1} parent=1 // pred_fallthru
      _
    // Predicated region
    $region6: #{tpu_custom_call.1} parent=1 // pred_check
      _
    $region7: #{tpu_custom_call.1} parent=1 // pred_check_branch
      %32 = sbr.rel (0) target = $region9
    $region8: #{tpu_custom_call.1} parent=1 // pred_region
      _
    $region9: #{tpu_custom_call.1} parent=1 // pred_fallthru
      _
    // Predicated region
    $region10: #{tpu_custom_call.1} parent=1 // pred_check
      _
    $region11: #{tpu_custom_call.1} parent=1 // pred_check_branch
      %34 = sbr.rel (0) target = $region13
    $region12: #{tpu_custom_call.1} parent=1 // pred_region
      %s36 = ssub.s32 128, 128
      %37 = vsyncadd [#allocation8], %s36
      %s39 = sshll.u32 [#allocation7], 4
      %s40 = int_to_ptr.vmem [resolvable:$true] %s39
      %42 = dma.hbm_to_vmem [thread:$0]  %s2, 128, %s40, [#allocation8]
    $region13: #{tpu_custom_call.1} parent=1 // pred_fallthru
      _
    // Predicated region
    $region14: #{tpu_custom_call.1} parent=1 // pred_check
      _
    $region15: #{tpu_custom_call.1} parent=1 // pred_check_branch
      %44 = sbr.rel (0) target = $region17
    $region16: #{tpu_custom_call.1} parent=1 // pred_region
      _
    $region17: #{tpu_custom_call.1} parent=1 // pred_fallthru
      _
    // Predicated region
    $region18: #{tpu_custom_call.1} parent=1 // pred_check
      _
    $region19: #{tpu_custom_call.1} parent=1 // pred_check_branch
      %46 = sbr.rel (0) target = $region21
    $region20: #{tpu_custom_call.1} parent=1 // pred_region
      _
    $region21: #{tpu_custom_call.1} parent=1 // pred_fallthru
      _
    // Predicated region
    $region22: #{tpu_custom_call.1} parent=1 // pred_check
      _
    $region23: #{tpu_custom_call.1} parent=1 // pred_check_branch
      %48 = sbr.rel (0) target = $region25
    $region24: #{tpu_custom_call.1} parent=1 // pred_region
      _
    $region25: #{tpu_custom_call.1} parent=1 // pred_fallthru
      _
    // Predicated region
    $region26: #{tpu_custom_call.1} parent=1 // pred_check
      _
    $region27: #{tpu_custom_call.1} parent=1 // pred_check_branch
      %50 = sbr.rel (0) target = $region29
    $region28: #{tpu_custom_call.1} parent=1 // pred_region
      _
    $region29: #{tpu_custom_call.1} parent=1 // pred_fallthru
      _
    // Predicated region
    $region30: #{tpu_custom_call.1} parent=1 // pred_check
      _
    $region31: #{tpu_custom_call.1} parent=1 // pred_check_branch
      %52 = sbr.rel (0) target = $region33
    $region32: #{tpu_custom_call.1} parent=1 // pred_region
      _
    $region33: #{tpu_custom_call.1} parent=1 // pred_fallthru
      _
    // Predicated region
    $region34: #{tpu_custom_call.1} parent=1 // pred_check
      _
    $region35: #{tpu_custom_call.1} parent=1 // pred_check_branch
      %54 = sbr.rel (0) target = $region37
    $region36: #{tpu_custom_call.1} parent=1 // pred_region
      _
    $region37: #{tpu_custom_call.1} parent=1 // pred_fallthru
      _
    // Predicated region
    $region38: #{tpu_custom_call.1} parent=1 // pred_check
      _
    $region39: #{tpu_custom_call.1} parent=1 // pred_check_branch
      %56 = sbr.rel (0) target = $region41
    $region40: #{tpu_custom_call.1} parent=1 // pred_region
      _
    $region41: #{tpu_custom_call.1} parent=1 // pred_fallthru
      _
    // Predicated region
    $region42: #{tpu_custom_call.1} parent=1 // pred_check
      _
    $region43: #{tpu_custom_call.1} parent=1 // pred_check_branch
      %58 = sbr.rel (0) target = $region45
    $region44: #{tpu_custom_call.1} parent=1 // pred_region
      _
    $region45: #{tpu_custom_call.1} parent=1 // pred_fallthru
      _
    // Predicated region
    $region46: #{tpu_custom_call.1} parent=1 // pred_check
      _
    $region47: #{tpu_custom_call.1} parent=1 // pred_check_branch
      %60 = sbr.rel (0) target = $region49
    $region48: #{tpu_custom_call.1} parent=1 // pred_region
      %61 = dma.done [#allocation5], 128
    $region49: #{tpu_custom_call.1} parent=1 // pred_fallthru
      _
    // Predicated region
    $region50: #{tpu_custom_call.1} parent=1 // pred_check
      _
    $region51: #{tpu_custom_call.1} parent=1 // pred_check_branch
      %63 = sbr.rel (0) target = $region53
    $region52: #{tpu_custom_call.1} parent=1 // pred_region
      %64 = dma.done [#allocation8], 128
    $region53: #{tpu_custom_call.1} parent=1 // pred_fallthru
      _
    %v65 = vld [vmem:[#allocation4] sm:$0xff]
    %vm66 = vcmask 130048
    %67 = vst.msk [vmem:[#allocation2] sm:$0xff] %vm66, %v65
    %v68 = vld [vmem:[%s1] sm:$0xff]
    %70 = vrot.lane.b32.xlu0 %v68, 16
    %v71 = vpop.permute.xlu0 %70
    %vm73 = vcmask 195712
    %74 = vst.msk [vmem:[#allocation2] sm:$0xff] %vm73, %v71
    %v75 = vld [vmem:[#allocation7] sm:$0xff]
    %77 = vrot.lane.b32.xlu0 %v75, 24
    %v78 = vpop.permute.xlu0 %77
    %vm80 = vcmask 261312
    %81 = vst.msk [vmem:[#allocation2] sm:$0xff] %vm80, %v78
    %v82 = vld [vmem:[#allocation2] sm:$0xff]
    %v83 = vld [vmem:[%s3] sm:$0xff]
    %v84 = vld [vmem:[%s3 + $0x8] sm:$0xff]
    %v85 = vld [vmem:[%s3 + $0x10] sm:$0xff]
    %v86 = vld [vmem:[%s3 + $0x18] sm:$0xff]
    %v87 = vld [vmem:[%s4] sm:$0xff]
    %v88 = vld [vmem:[%s4 + $0x8] sm:$0xff]
    %v89 = vld [vmem:[%s4 + $0x10] sm:$0xff]
    %v90 = vld [vmem:[%s4 + $0x18] sm:$0xff]
    %92 = vset.pattern.permute.xlu0 0
    %93 = vperm.xlu0 %92, %v87
    %v94 = vpop.permute.xlu0 %93
    %97 = vset.pattern.permute.xlu0 0
    %98 = vperm.xlu0 %97, %v88
    %v99 = vpop.permute.xlu0 %98
    %102 = vset.pattern.permute.xlu0 0
    %103 = vperm.xlu0 %102, %v89
    %v104 = vpop.permute.xlu0 %103
    %107 = vset.pattern.permute.xlu0 0
    %108 = vperm.xlu0 %107, %v90
    %v109 = vpop.permute.xlu0 %108
    %vm111 = vcmask 261120
    %v113 = vsel %vm111, %v83, 0
    %v116 = vsel %vm111, %v84, 0
    %v119 = vsel %vm111, %v85, 0
    %v122 = vsel %vm111, %v86, 0
    %v125 = vsel %vm111, %v82, 0
    %127 = vmatprep.subr.mxu0 0.0
    %128 = vmatpush1.xpose.msra.mxu0 %v125
    %129 = vmatprep.subr.mxu0 0.0
    %130 = vmatpush1.xpose.msra.mxu0 0.0
    %131 = vmatprep.subr.mxu0 0.0
    %132 = vmatpush1.xpose.msra.mxu0 0.0
    %133 = vmatprep.subr.mxu0 0.0
    %134 = vmatpush1.xpose.msra.mxu0 0.0
    %135 = vmatprep.subr.mxu0 0.0
    %136 = vmatpush1.xpose.msra.mxu0 0.0
    %137 = vmatprep.subr.mxu0 0.0
    %138 = vmatpush1.xpose.msra.mxu0 0.0
    %139 = vmatprep.subr.mxu0 0.0
    %140 = vmatpush1.xpose.msra.mxu0 0.0
    %141 = vmatprep.subr.mxu0 0.0
    %142 = vmatpush1.xpose.msra.mxu0 0.0
    %143 = vmatprep.subr.mxu0 0.0
    %144 = vmatpush1.xpose.msra.mxu0 0.0
    %145 = vmatprep.subr.mxu0 0.0
    %146 = vmatpush1.xpose.msra.mxu0 0.0
    %147 = vmatprep.subr.mxu0 0.0
    %148 = vmatpush1.xpose.msra.mxu0 0.0
    %149 = vmatprep.subr.mxu0 0.0
    %150 = vmatpush1.xpose.msra.mxu0 0.0
    %151 = vmatprep.subr.mxu0 0.0
    %152 = vmatpush1.xpose.msra.mxu0 0.0
    %153 = vmatprep.subr.mxu0 0.0
    %154 = vmatpush1.xpose.msra.mxu0 0.0
    %155 = vmatprep.subr.mxu0 0.0
    %156 = vmatpush1.xpose.msra.mxu0 0.0
    %157 = vmatprep.subr.mxu0 0.0
    %158 = vmatpush1.xpose.msra.mxu0 0.0
    %159 = vmatprep.subr.mxu0 0.0
    %160 = vmatpush1.xpose.msra.mxu0 0.0
    %161 = vmatprep.subr.mxu0 0.0
    %162 = vmatpush1.xpose.msra.mxu0 0.0
    %163 = vmatprep.subr.mxu0 0.0
    %164 = vmatpush1.xpose.msra.mxu0 0.0
    %165 = vmatprep.subr.mxu0 0.0
    %166 = vmatpush1.xpose.msra.mxu0 0.0
    %167 = vmatprep.subr.mxu0 0.0
    %168 = vmatpush1.xpose.msra.mxu0 0.0
    %169 = vmatprep.subr.mxu0 0.0
    %170 = vmatpush1.xpose.msra.mxu0 0.0
    %171 = vmatprep.subr.mxu0 0.0
    %172 = vmatpush1.xpose.msra.mxu0 0.0
    %173 = vmatprep.subr.mxu0 0.0
    %174 = vmatpush1.xpose.msra.mxu0 0.0
    %175 = vmatprep.subr.mxu0 0.0
    %176 = vmatpush1.xpose.msra.mxu0 0.0
    %177 = vmatprep.subr.mxu0 0.0
    %178 = vmatpush1.xpose.msra.mxu0 0.0
    %179 = vmatprep.subr.mxu0 0.0
    %180 = vmatpush1.xpose.msra.mxu0 0.0
    %181 = vmatprep.subr.mxu0 0.0
    %182 = vmatpush1.xpose.msra.mxu0 0.0
    %183 = vmatprep.subr.mxu0 0.0
    %184 = vmatpush1.xpose.msra.mxu0 0.0
    %185 = vmatprep.subr.mxu0 0.0
    %186 = vmatpush1.xpose.msra.mxu0 0.0
    %187 = vmatprep.subr.mxu0 0.0
    %188 = vmatpush1.xpose.msra.mxu0 0.0
    %189 = vmatprep.subr.mxu0 0.0
    %190 = vmatpush1.xpose.msra.mxu0 0.0
    %191 = vmatprep.mubr.f32.mxu0 0.0
    %192 = vmatmul.mubr.f32.gmra.mrb[0].mxu0 %v113
    %v193 = vpop.f32.mrb[0].mxu0
    %v194 = vadd.f32 %v94, %v193
    %v195 = vpop.f32.mrb[0].mxu0
    %196 = vmatprep.mubr.f32.mxu0 0.0
    %197 = vmatmul.mubr.f32.gmra.mrb[0].mxu0 %v116
    %v198 = vpop.f32.mrb[0].mxu0
    %v199 = vadd.f32 %v99, %v198
    %v200 = vpop.f32.mrb[0].mxu0
    %201 = vmatprep.mubr.f32.mxu0 0.0
    %202 = vmatmul.mubr.f32.gmra.mrb[0].mxu0 %v119
    %v203 = vpop.f32.mrb[0].mxu0
    %v204 = vadd.f32 %v104, %v203
    %v205 = vpop.f32.mrb[0].mxu0
    %206 = vmatprep.mubr.f32.mxu0 0.0
    %207 = vmatmul.mubr.f32.gmra.mrb[0].mxu0 %v122
    %v208 = vpop.f32.mrb[0].mxu0
    %v209 = vadd.f32 %v109, %v208
    %v210 = vpop.f32.mrb[0].mxu0
    %211 = vdwg.mxu0
    %v212 = vmax.f32 %v194, 0.0
    %v213 = vmax.f32 %v199, 0.0
    %v214 = vmax.f32 %v204, 0.0
    %v215 = vmax.f32 %v209, 0.0
    %v216 = vld [vmem:[%s5] sm:$0xff]
    %v217 = vld [vmem:[%s5 + $0x8] sm:$0xff]
    %v218 = vld [vmem:[%s5 + $0x10] sm:$0xff]
    %v219 = vld [vmem:[%s5 + $0x18] sm:$0xff]
    %v220 = vld [vmem:[%s6] sm:$0xff]
    %v221 = vld [vmem:[%s6 + $0x8] sm:$0xff]
    %v222 = vld [vmem:[%s6 + $0x10] sm:$0xff]
    %v223 = vld [vmem:[%s6 + $0x18] sm:$0xff]
    %225 = vset.pattern.permute.xlu0 0
    %226 = vperm.xlu0 %225, %v220
    %v227 = vpop.permute.xlu0 %226
    %230 = vset.pattern.permute.xlu0 0
    %231 = vperm.xlu0 %230, %v221
    %v232 = vpop.permute.xlu0 %231
    %235 = vset.pattern.permute.xlu0 0
    %236 = vperm.xlu0 %235, %v222
    %v237 = vpop.permute.xlu0 %236
    %240 = vset.pattern.permute.xlu0 0
    %241 = vperm.xlu0 %240, %v223
    %v242 = vpop.permute.xlu0 %241
    %v245 = vsel %vm111, %v216, 0
    %v248 = vsel %vm111, %v217, 0
    %v251 = vsel %vm111, %v218, 0
    %v254 = vsel %vm111, %v219, 0
    %256 = vmatprep.subr.mxu0 0.0
    %257 = vmatpush1.msra.mxu0 %v212
    %258 = vmatprep.subr.mxu0 0.0
    %259 = vmatpush1.msra.mxu0 %v213
    %260 = vmatprep.subr.mxu0 0.0
    %261 = vmatpush1.msra.mxu0 %v214
    %262 = vmatprep.subr.mxu0 0.0
    %263 = vmatpush1.msra.mxu0 %v215
    %264 = vmatprep.subr.mxu0 0.0
    %265 = vmatpush1.msra.mxu0 0.0
    %266 = vmatprep.subr.mxu0 0.0
    %267 = vmatpush1.msra.mxu0 0.0
    %268 = vmatprep.subr.mxu0 0.0
    %269 = vmatpush1.msra.mxu0 0.0
    %270 = vmatprep.subr.mxu0 0.0
    %271 = vmatpush1.msra.mxu0 0.0
    %272 = vmatprep.subr.mxu0 0.0
    %273 = vmatpush1.msra.mxu0 0.0
    %274 = vmatprep.subr.mxu0 0.0
    %275 = vmatpush1.msra.mxu0 0.0
    %276 = vmatprep.subr.mxu0 0.0
    %277 = vmatpush1.msra.mxu0 0.0
    %278 = vmatprep.subr.mxu0 0.0
    %279 = vmatpush1.msra.mxu0 0.0
    %280 = vmatprep.subr.mxu0 0.0
    %281 = vmatpush1.msra.mxu0 0.0
    %282 = vmatprep.subr.mxu0 0.0
    %283 = vmatpush1.msra.mxu0 0.0
    %284 = vmatprep.subr.mxu0 0.0
    %285 = vmatpush1.msra.mxu0 0.0
    %286 = vmatprep.subr.mxu0 0.0
    %287 = vmatpush1.msra.mxu0 0.0
    %288 = vmatprep.subr.mxu0 0.0
    %289 = vmatpush1.msra.mxu0 0.0
    %290 = vmatprep.subr.mxu0 0.0
    %291 = vmatpush1.msra.mxu0 0.0
    %292 = vmatprep.subr.mxu0 0.0
    %293 = vmatpush1.msra.mxu0 0.0
    %294 = vmatprep.subr.mxu0 0.0
    %295 = vmatpush1.msra.mxu0 0.0
    %296 = vmatprep.subr.mxu0 0.0
    %297 = vmatpush1.msra.mxu0 0.0
    %298 = vmatprep.subr.mxu0 0.0
    %299 = vmatpush1.msra.mxu0 0.0
    %300 = vmatprep.subr.mxu0 0.0
    %301 = vmatpush1.msra.mxu0 0.0
    %302 = vmatprep.subr.mxu0 0.0
    %303 = vmatpush1.msra.mxu0 0.0
    %304 = vmatprep.subr.mxu0 0.0
    %305 = vmatpush1.msra.mxu0 0.0
    %306 = vmatprep.subr.mxu0 0.0
    %307 = vmatpush1.msra.mxu0 0.0
    %308 = vmatprep.subr.mxu0 0.0
    %309 = vmatpush1.msra.mxu0 0.0
    %310 = vmatprep.subr.mxu0 0.0
    %311 = vmatpush1.msra.mxu0 0.0
    %312 = vmatprep.subr.mxu0 0.0
    %313 = vmatpush1.msra.mxu0 0.0
    %314 = vmatprep.subr.mxu0 0.0
    %315 = vmatpush1.msra.mxu0 0.0
    %316 = vmatprep.subr.mxu0 0.0
    %317 = vmatpush1.msra.mxu0 0.0
    %318 = vmatprep.subr.mxu0 0.0
    %319 = vmatpush1.msra.mxu0 0.0
    %320 = vmatprep.mubr.f32.mxu0 0.0
    %321 = vmatmul.mubr.f32.gmra.mrb[0].mxu0 %v245
    %v322 = vpop.f32.mrb[0].mxu0
    %v323 = vadd.f32 %v227, %v322
    %v324 = vpop.f32.mrb[0].mxu0
    %325 = vmatprep.mubr.f32.mxu0 0.0
    %326 = vmatmul.mubr.f32.gmra.mrb[0].mxu0 %v248
    %v327 = vpop.f32.mrb[0].mxu0
    %v328 = vadd.f32 %v232, %v327
    %v329 = vpop.f32.mrb[0].mxu0
    %330 = vmatprep.mubr.f32.mxu0 0.0
    %331 = vmatmul.mubr.f32.gmra.mrb[0].mxu0 %v251
    %v332 = vpop.f32.mrb[0].mxu0
    %v333 = vadd.f32 %v237, %v332
    %v334 = vpop.f32.mrb[0].mxu0
    %335 = vmatprep.mubr.f32.mxu0 0.0
    %336 = vmatmul.mubr.f32.gmra.mrb[0].mxu0 %v254
    %v337 = vpop.f32.mrb[0].mxu0
    %v338 = vadd.f32 %v242, %v337
    %v339 = vpop.f32.mrb[0].mxu0
    %340 = vdwg.mxu0
    %v341 = vmax.f32 %v323, 0.0
    %v342 = vmax.f32 %v328, 0.0
    %v343 = vmax.f32 %v333, 0.0
    %v344 = vmax.f32 %v338, 0.0
    %v345 = vld [vmem:[%s7] sm:$0xff]
    %v346 = vld [vmem:[%s7 + $0x8] sm:$0xff]
    %v347 = vld [vmem:[%s7 + $0x10] sm:$0xff]
    %v348 = vld [vmem:[%s7 + $0x18] sm:$0xff]
    %v349 = vld [vmem:[%s8] sm:$0xff]
    %v350 = vld [vmem:[%s8 + $0x8] sm:$0xff]
    %v351 = vld [vmem:[%s8 + $0x10] sm:$0xff]
    %v352 = vld [vmem:[%s8 + $0x18] sm:$0xff]
    %354 = vset.pattern.permute.xlu0 0
    %355 = vperm.xlu0 %354, %v349
    %v356 = vpop.permute.xlu0 %355
    %359 = vset.pattern.permute.xlu0 0
    %360 = vperm.xlu0 %359, %v350
    %v361 = vpop.permute.xlu0 %360
    %364 = vset.pattern.permute.xlu0 0
    %365 = vperm.xlu0 %364, %v351
    %v366 = vpop.permute.xlu0 %365
    %369 = vset.pattern.permute.xlu0 0
    %370 = vperm.xlu0 %369, %v352
    %v371 = vpop.permute.xlu0 %370
    %v374 = vsel %vm111, %v345, 0
    %v377 = vsel %vm111, %v346, 0
    %v380 = vsel %vm111, %v347, 0
    %v383 = vsel %vm111, %v348, 0
    %385 = vmatprep.subr.mxu0 0.0
    %386 = vmatpush1.msra.mxu0 %v341
    %387 = vmatprep.subr.mxu0 0.0
    %388 = vmatpush1.msra.mxu0 %v342
    %389 = vmatprep.subr.mxu0 0.0
    %390 = vmatpush1.msra.mxu0 %v343
    %391 = vmatprep.subr.mxu0 0.0
    %392 = vmatpush1.msra.mxu0 %v344
    %393 = vmatprep.subr.mxu0 0.0
    %394 = vmatpush1.msra.mxu0 0.0
    %395 = vmatprep.subr.mxu0 0.0
    %396 = vmatpush1.msra.mxu0 0.0
    %397 = vmatprep.subr.mxu0 0.0
    %398 = vmatpush1.msra.mxu0 0.0
    %399 = vmatprep.subr.mxu0 0.0
    %400 = vmatpush1.msra.mxu0 0.0
    %401 = vmatprep.subr.mxu0 0.0
    %402 = vmatpush1.msra.mxu0 0.0
    %403 = vmatprep.subr.mxu0 0.0
    %404 = vmatpush1.msra.mxu0 0.0
    %405 = vmatprep.subr.mxu0 0.0
    %406 = vmatpush1.msra.mxu0 0.0
    %407 = vmatprep.subr.mxu0 0.0
    %408 = vmatpush1.msra.mxu0 0.0
    %409 = vmatprep.subr.mxu0 0.0
    %410 = vmatpush1.msra.mxu0 0.0
    %411 = vmatprep.subr.mxu0 0.0
    %412 = vmatpush1.msra.mxu0 0.0
    %413 = vmatprep.subr.mxu0 0.0
    %414 = vmatpush1.msra.mxu0 0.0
    %415 = vmatprep.subr.mxu0 0.0
    %416 = vmatpush1.msra.mxu0 0.0
    %417 = vmatprep.subr.mxu0 0.0
    %418 = vmatpush1.msra.mxu0 0.0
    %419 = vmatprep.subr.mxu0 0.0
    %420 = vmatpush1.msra.mxu0 0.0
    %421 = vmatprep.subr.mxu0 0.0
    %422 = vmatpush1.msra.mxu0 0.0
    %423 = vmatprep.subr.mxu0 0.0
    %424 = vmatpush1.msra.mxu0 0.0
    %425 = vmatprep.subr.mxu0 0.0
    %426 = vmatpush1.msra.mxu0 0.0
    %427 = vmatprep.subr.mxu0 0.0
    %428 = vmatpush1.msra.mxu0 0.0
    %429 = vmatprep.subr.mxu0 0.0
    %430 = vmatpush1.msra.mxu0 0.0
    %431 = vmatprep.subr.mxu0 0.0
    %432 = vmatpush1.msra.mxu0 0.0
    %433 = vmatprep.subr.mxu0 0.0
    %434 = vmatpush1.msra.mxu0 0.0
    %435 = vmatprep.subr.mxu0 0.0
    %436 = vmatpush1.msra.mxu0 0.0
    %437 = vmatprep.subr.mxu0 0.0
    %438 = vmatpush1.msra.mxu0 0.0
    %439 = vmatprep.subr.mxu0 0.0
    %440 = vmatpush1.msra.mxu0 0.0
    %441 = vmatprep.subr.mxu0 0.0
    %442 = vmatpush1.msra.mxu0 0.0
    %443 = vmatprep.subr.mxu0 0.0
    %444 = vmatpush1.msra.mxu0 0.0
    %445 = vmatprep.subr.mxu0 0.0
    %446 = vmatpush1.msra.mxu0 0.0
    %447 = vmatprep.subr.mxu0 0.0
    %448 = vmatpush1.msra.mxu0 0.0
    %449 = vmatprep.mubr.f32.mxu0 0.0
    %450 = vmatmul.mubr.f32.gmra.mrb[0].mxu0 %v374
    %v451 = vpop.f32.mrb[0].mxu0
    %v452 = vadd.f32 %v356, %v451
    %v453 = vpop.f32.mrb[0].mxu0
    %454 = vmatprep.mubr.f32.mxu0 0.0
    %455 = vmatmul.mubr.f32.gmra.mrb[0].mxu0 %v377
    %v456 = vpop.f32.mrb[0].mxu0
    %v457 = vadd.f32 %v361, %v456
    %v458 = vpop.f32.mrb[0].mxu0
    %459 = vmatprep.mubr.f32.mxu0 0.0
    %460 = vmatmul.mubr.f32.gmra.mrb[0].mxu0 %v380
    %v461 = vpop.f32.mrb[0].mxu0
    %v462 = vadd.f32 %v366, %v461
    %v463 = vpop.f32.mrb[0].mxu0
    %464 = vmatprep.mubr.f32.mxu0 0.0
    %465 = vmatmul.mubr.f32.gmra.mrb[0].mxu0 %v383
    %v466 = vpop.f32.mrb[0].mxu0
    %v467 = vadd.f32 %v371, %v466
    %v468 = vpop.f32.mrb[0].mxu0
    %469 = vdwg.mxu0
    %v470 = vmax.f32 %v452, 0.0
    %v471 = vmax.f32 %v457, 0.0
    %v472 = vmax.f32 %v462, 0.0
    %v473 = vmax.f32 %v467, 0.0
    %v474 = vld [vmem:[%s9] sm:$0x1]
    %v475 = vld [vmem:[#allocation3] sm:$0x1]
    %477 = vset.pattern.permute.xlu0 0
    %478 = vperm.xlu0 %477, %v475
    %v479 = vpop.permute.xlu0 %478
    %v481 = vlaneseq
    %v482 = vshrl.u32 %v481, 7
    %v483 = vsub.s32 0, %v482
    %v484 = vrot.slane %v479, %v483
    %v486 = vsel %vm111, %v474, 0
    %488 = vmatprep.subr.mxu0 0.0
    %489 = vmatpush1.msra.mxu0 %v470
    %490 = vmatprep.subr.mxu0 0.0
    %491 = vmatpush1.msra.mxu0 %v471
    %492 = vmatprep.subr.mxu0 0.0
    %493 = vmatpush1.msra.mxu0 %v472
    %494 = vmatprep.subr.mxu0 0.0
    %495 = vmatpush1.msra.mxu0 %v473
    %496 = vmatprep.subr.mxu0 0.0
    %497 = vmatpush1.msra.mxu0 0.0
    %498 = vmatprep.subr.mxu0 0.0
    %499 = vmatpush1.msra.mxu0 0.0
    %500 = vmatprep.subr.mxu0 0.0
    %501 = vmatpush1.msra.mxu0 0.0
    %502 = vmatprep.subr.mxu0 0.0
    %503 = vmatpush1.msra.mxu0 0.0
    %504 = vmatprep.subr.mxu0 0.0
    %505 = vmatpush1.msra.mxu0 0.0
    %506 = vmatprep.subr.mxu0 0.0
    %507 = vmatpush1.msra.mxu0 0.0
    %508 = vmatprep.subr.mxu0 0.0
    %509 = vmatpush1.msra.mxu0 0.0
    %510 = vmatprep.subr.mxu0 0.0
    %511 = vmatpush1.msra.mxu0 0.0
    %512 = vmatprep.subr.mxu0 0.0
    %513 = vmatpush1.msra.mxu0 0.0
    %514 = vmatprep.subr.mxu0 0.0
    %515 = vmatpush1.msra.mxu0 0.0
    %516 = vmatprep.subr.mxu0 0.0
    %517 = vmatpush1.msra.mxu0 0.0
    %518 = vmatprep.subr.mxu0 0.0
    %519 = vmatpush1.msra.mxu0 0.0
    %520 = vmatprep.subr.mxu0 0.0
    %521 = vmatpush1.msra.mxu0 0.0
    %522 = vmatprep.subr.mxu0 0.0
    %523 = vmatpush1.msra.mxu0 0.0
    %524 = vmatprep.subr.mxu0 0.0
    %525 = vmatpush1.msra.mxu0 0.0
    %526 = vmatprep.subr.mxu0 0.0
    %527 = vmatpush1.msra.mxu0 0.0
    %528 = vmatprep.subr.mxu0 0.0
    %529 = vmatpush1.msra.mxu0 0.0
    %530 = vmatprep.subr.mxu0 0.0
    %531 = vmatpush1.msra.mxu0 0.0
    %532 = vmatprep.subr.mxu0 0.0
    %533 = vmatpush1.msra.mxu0 0.0
    %534 = vmatprep.subr.mxu0 0.0
    %535 = vmatpush1.msra.mxu0 0.0
    %536 = vmatprep.subr.mxu0 0.0
    %537 = vmatpush1.msra.mxu0 0.0
    %538 = vmatprep.subr.mxu0 0.0
    %539 = vmatpush1.msra.mxu0 0.0
    %540 = vmatprep.subr.mxu0 0.0
    %541 = vmatpush1.msra.mxu0 0.0
    %542 = vmatprep.subr.mxu0 0.0
    %543 = vmatpush1.msra.mxu0 0.0
    %544 = vmatprep.subr.mxu0 0.0
    %545 = vmatpush1.msra.mxu0 0.0
    %546 = vmatprep.subr.mxu0 0.0
    %547 = vmatpush1.msra.mxu0 0.0
    %548 = vmatprep.subr.mxu0 0.0
    %549 = vmatpush1.msra.mxu0 0.0
    %550 = vmatprep.subr.mxu0 0.0
    %551 = vmatpush1.msra.mxu0 0.0
    %552 = vmatprep.mubr.f32.mxu0 0.0
    %553 = vmatmul.mubr.f32.gmra.mrb[0].mxu0 %v486
    %v554 = vpop.f32.mrb[0].mxu0
    %v555 = vadd.f32 %v484, %v554
    %v556 = vpop.f32.mrb[0].mxu0
    %557 = vdwg.mxu0
    %v558 = vsub.f32 0.0, %v555
    %v559 = vmul.f32 %v558, 1.442695
    %v560 = vpow.pop %v559
    %v561 = vadd.f32 %v560, 1.0
    %v562 = vrcp.pop %v561
    %vm563 = vcmask 57344
    %564 = vst.msk [vmem:[#allocation9] sm:$0x1] %vm563, %v562
    // Predicated region
    $region54: #{tpu_custom_call.1} parent=1 // pred_check
      _
    $region55: #{tpu_custom_call.1} parent=1 // pred_check_branch
      %566 = sbr.rel (0) target = $region57
    $region56: #{tpu_custom_call.1} parent=1 // pred_region
      %s568 = ssub.s32 16, 16
      %569 = vsyncadd [#allocation6], %s568
      %s571 = sshll.u32 [#allocation9], 4
      %s572 = int_to_ptr.vmem [resolvable:$true] %s571
      %574 = dma.vmem_to_hbm [thread:$0]  %s572, 16, %s11, [#allocation6]
    $region57: #{tpu_custom_call.1} parent=1 // pred_fallthru
      _
    // Predicated region
    $region58: #{tpu_custom_call.1} parent=1 // pred_check
      _
    $region59: #{tpu_custom_call.1} parent=1 // pred_check_branch
      %576 = sbr.rel (0) target = $region61
    $region60: #{tpu_custom_call.1} parent=1 // pred_region
      %577 = dma.done [#allocation6], 16
    $region61: #{tpu_custom_call.1} parent=1 // pred_fallthru
      _
    %578 = vsyncpa [#allocation5], 1
    %579 = vsyncpa [#allocation8], 1
    %580 = vsyncpa [#allocation6], 1

</llo_original>
